<compile_context>
chip_gen: v7x
topology: tpu7x:2x2x1
jax: 0.10.0
libtpu: 0.0.40
codegen_flags: <defaults>
</compile_context>

<pallas_src>
import jax
import jax.numpy as jnp
from jax.experimental import pallas as pl
from jax.experimental.pallas import tpu as pltpu


def _blur5_kernel(k_ref, x_ref, o_ref):
    # k_ref: (5,) f32 separable taps in SMEM (outer(k, k) == the 5x5 Gaussian)
    # x_ref: (bc, H, W) input planes in VMEM
    # o_ref: (bc, H, W) output planes in VMEM
    _, H, W = o_ref.shape

    xf = x_ref[...].astype(jnp.float32)                      # one cast per block
    rows = jax.lax.broadcasted_iota(jnp.int32, xf.shape, 1)  # sublane index
    cols = jax.lax.broadcasted_iota(jnp.int32, xf.shape, 2)  # lane index

    def tap_pass(v, size, idx, axis):
        # 5-tap correlation along `axis` with zero ("same", padding=2) borders:
        #   out[i] = sum_d k[d+2] * v[i+d],  v[.] := 0 outside [0, size).
        acc = k_ref[2] * v
        for d in (-2, -1, 1, 2):
            # roll so that shifted[i] = v[i + d] (with wraparound) ...
            shifted = pltpu.roll(v, shift=(-d) % size, axis=axis)
            # ... then kill the wrapped rows/cols (zero-padding semantics).
            valid = (idx < size - d) if d > 0 else (idx >= -d)
            acc = acc + k_ref[d + 2] * jnp.where(valid, shifted, 0.0)
        return acc

    acc_v = tap_pass(xf, H, rows, axis=1)      # vertical pass (sublane axis)
    acc = tap_pass(acc_v, W, cols, axis=2)     # horizontal pass (lane axis)
    o_ref[...] = acc.astype(o_ref.dtype)


def _gaussian_taps5(sigma):
    """Normalized 1-D 5-tap Gaussian; outer(k, k) equals the reference 5x5 kernel."""
    s = jnp.clip(sigma, 0.01, 10.0)
    ax = jnp.arange(-2, 3, dtype=jnp.float32)
    k = jnp.exp(-(ax * ax) / (2.0 * s * s))
    return (k / jnp.sum(k)).astype(jnp.float32)


def _tpu_budget():
    """Best-effort (VMEM bytes, TensorCores-per-chip); safe defaults if unknown."""
    vmem_bytes = 128 * 1024 * 1024
    num_cores = 1
    try:
        info = pltpu.get_tpu_info()
        vmem_bytes = int(getattr(info, "vmem_capacity_bytes", vmem_bytes))
        for name in ("num_cores", "tensorcores_per_chip", "core_count"):
            v = getattr(info, name, None)
            if v:
                num_cores = int(v)
                break
    except Exception:
        pass
    return vmem_bytes, num_cores


def _pick_block(nc, h, w, itemsize, vmem_limit, num_cores):
    """Planes per grid step.

    Footprint per step ≈ 2x in + 2x out (double-buffered) + a few block-sized
    f32 temporaries, so target ~vmem_limit/14 of input bytes per block.  Keep
    >= num_cores grid steps only on multi-TensorCore chips (v7x megacore);
    on single-TC parts always use the largest divisor block.
    """
    target_bytes = max(vmem_limit // 14, 1 << 20)
    per_plane = max(h * w * itemsize, 1)
    bc = max(1, min(nc, target_bytes // per_plane))
    while nc % bc:
        bc -= 1
    if num_cores > 1 and nc >= num_cores and nc // bc < num_cores:
        bc = max(1, nc // num_cores)
        while nc % bc:
            bc -= 1
    return bc


def dab_blur5(x, sigma):
    """Depthwise 5x5 Gaussian blur, padding=2 (same semantics as DABBlur5.forward)."""
    N, C, H, W = x.shape
    k1 = _gaussian_taps5(sigma)                   # (5,) separable taps

    nc = N * C
    xr = x.reshape(nc, H, W)                      # depthwise => independent planes

    vmem_bytes, num_cores = _tpu_budget()
    vmem_limit = int(min(vmem_bytes - (16 << 20), 100 << 20))
    vmem_limit = max(vmem_limit, 32 << 20)
    bc = _pick_block(nc, H, W, x.dtype.itemsize, vmem_limit, num_cores)
    grid = (nc // bc,)

    out = pl.pallas_call(
        _blur5_kernel,
        out_shape=jax.ShapeDtypeStruct((nc, H, W), x.dtype),
        grid_spec=pltpu.PrefetchScalarGridSpec(
            num_scalar_prefetch=0,
            grid=grid,
            in_specs=[
                # 1-D taps in SMEM (cheap scalar reads, no (8,128) tile padding).
                pl.BlockSpec(memory_space=pltpu.MemorySpace.SMEM),
                # A block of bc full planes; last two dims equal the full array
                # dims, so the (8,128) rule is satisfied for any H, W.
                pl.BlockSpec((bc, H, W), lambda i: (i, 0, 0)),
            ],
            out_specs=pl.BlockSpec((bc, H, W), lambda i: (i, 0, 0)),
        ),
        compiler_params=pltpu.CompilerParams(
            dimension_semantics=("parallel",),
            vmem_limit_bytes=vmem_limit,
        ),
    )(k1, xr)
    return out.reshape(N, C, H, W)


if __name__ == "__main__":
    # Deterministic parameter init (matches nn.Parameter(torch.tensor(1.0))).
    sigma = jnp.float32(1.0)

    key = jax.random.PRNGKey(0)
    x = jax.random.normal(key, (2, 4, 16, 16), dtype=jnp.float32)

    y = dab_blur5(x, sigma)
    jax.block_until_ready(y)

    # Reference: depthwise conv with the full 5x5 kernel (as in the PyTorch module).
    s = jnp.clip(sigma, 0.01, 10.0)
    ax = jnp.arange(-2, 3, dtype=jnp.float32)
    xx, yy = jnp.meshgrid(ax, ax, indexing="ij")
    k2 = jnp.exp(-(xx ** 2 + yy ** 2) / (2.0 * s ** 2))
    k2 = k2 / jnp.sum(k2)
    C = x.shape[1]
    kd = jnp.broadcast_to(k2[None, None], (C, 1, 5, 5))
    y_ref = jax.lax.conv_general_dilated(
        x, kd, window_strides=(1, 1), padding=((2, 2), (2, 2)),
        dimension_numbers=("NCHW", "OIHW", "NCHW"), feature_group_count=C)

    assert y.shape == x.shape
    assert jnp.max(jnp.abs(y - y_ref)) < 1e-5

    print("KERNEL_OK")
</pallas_src>

<mosaic_0001>
module attributes {stable_mosaic.version = 11 : i64} {
  func.func @_blur5_kernel(%arg0: i32, %arg1: memref<5xf32, #tpu.memory_space<smem>>, %arg2: memref<8x16x16xf32, #tpu.memory_space<vmem>>, %arg3: memref<8x16x16xf32, #tpu.memory_space<vmem>>) attributes {dimension_semantics = [#tpu.dimension_semantics<parallel>], iteration_bounds = array<i64: 1>, scalar_prefetch = 0 : i64, scratch_operands = 0 : i64, tpu.core_type = #tpu.core_type<tc>, window_params = [{transform_indices = @transform_0, window_bounds = array<i64: 5>}, {transform_indices = @transform_1, window_bounds = array<i64: 8, 16, 16>}, {transform_indices = @transform_2, window_bounds = array<i64: 8, 16, 16>}]} {
    %c0 = arith.constant 0 : index
    %c0_0 = arith.constant 0 : index
    %c0_1 = arith.constant 0 : index
    %0 = vector.load %arg2[%c0, %c0_0, %c0_1] : memref<8x16x16xf32, #tpu.memory_space<vmem>>, vector<8x16x16xf32>
    %1 = tpu.iota {dimensions = array<i32: 1>} : vector<8x16x16xi32>
    %2 = tpu.iota {dimensions = array<i32: 2>} : vector<8x16x16xi32>
    %c2 = arith.constant 2 : index
    %3 = memref.load %arg1[%c2] : memref<5xf32, #tpu.memory_space<smem>>
    %4 = vector.broadcast %3 : f32 to vector<8x16x16xf32>
    %5 = arith.mulf %4, %0 : vector<8x16x16xf32>
    %c2_i32 = arith.constant 2 : i32
    %6 = tpu.dynamic_rotate %0 by %c2_i32 dim 1 : vector<8x16x16xf32>, i32 -> vector<8x16x16xf32>
    %c2_i32_2 = arith.constant 2 : i32
    %7 = vector.broadcast %c2_i32_2 : i32 to vector<8x16x16xi32>
    %8 = arith.cmpi sge, %1, %7 : vector<8x16x16xi32>
    %c0_3 = arith.constant 0 : index
    %9 = memref.load %arg1[%c0_3] : memref<5xf32, #tpu.memory_space<smem>>
    %cst = arith.constant 0.000000e+00 : f32
    %10 = vector.broadcast %cst : f32 to vector<8x16x16xf32>
    %11 = arith.select %8, %6, %10 : vector<8x16x16xi1>, vector<8x16x16xf32>
    %12 = vector.broadcast %9 : f32 to vector<8x16x16xf32>
    %13 = arith.mulf %12, %11 : vector<8x16x16xf32>
    %14 = arith.addf %5, %13 : vector<8x16x16xf32>
    %c1_i32 = arith.constant 1 : i32
    %15 = tpu.dynamic_rotate %0 by %c1_i32 dim 1 : vector<8x16x16xf32>, i32 -> vector<8x16x16xf32>
    %c1_i32_4 = arith.constant 1 : i32
    %16 = vector.broadcast %c1_i32_4 : i32 to vector<8x16x16xi32>
    %17 = arith.cmpi sge, %1, %16 : vector<8x16x16xi32>
    %c1 = arith.constant 1 : index
    %18 = memref.load %arg1[%c1] : memref<5xf32, #tpu.memory_space<smem>>
    %cst_5 = arith.constant 0.000000e+00 : f32
    %19 = vector.broadcast %cst_5 : f32 to vector<8x16x16xf32>
    %20 = arith.select %17, %15, %19 : vector<8x16x16xi1>, vector<8x16x16xf32>
    %21 = vector.broadcast %18 : f32 to vector<8x16x16xf32>
    %22 = arith.mulf %21, %20 : vector<8x16x16xf32>
    %23 = arith.addf %14, %22 : vector<8x16x16xf32>
    %c15_i32 = arith.constant 15 : i32
    %24 = tpu.dynamic_rotate %0 by %c15_i32 dim 1 : vector<8x16x16xf32>, i32 -> vector<8x16x16xf32>
    %c15_i32_6 = arith.constant 15 : i32
    %25 = vector.broadcast %c15_i32_6 : i32 to vector<8x16x16xi32>
    %26 = arith.cmpi slt, %1, %25 : vector<8x16x16xi32>
    %c3 = arith.constant 3 : index
    %27 = memref.load %arg1[%c3] : memref<5xf32, #tpu.memory_space<smem>>
    %cst_7 = arith.constant 0.000000e+00 : f32
    %28 = vector.broadcast %cst_7 : f32 to vector<8x16x16xf32>
    %29 = arith.select %26, %24, %28 : vector<8x16x16xi1>, vector<8x16x16xf32>
    %30 = vector.broadcast %27 : f32 to vector<8x16x16xf32>
    %31 = arith.mulf %30, %29 : vector<8x16x16xf32>
    %32 = arith.addf %23, %31 : vector<8x16x16xf32>
    %c14_i32 = arith.constant 14 : i32
    %33 = tpu.dynamic_rotate %0 by %c14_i32 dim 1 : vector<8x16x16xf32>, i32 -> vector<8x16x16xf32>
    %c14_i32_8 = arith.constant 14 : i32
    %34 = vector.broadcast %c14_i32_8 : i32 to vector<8x16x16xi32>
    %35 = arith.cmpi slt, %1, %34 : vector<8x16x16xi32>
    %c4 = arith.constant 4 : index
    %36 = memref.load %arg1[%c4] : memref<5xf32, #tpu.memory_space<smem>>
    %cst_9 = arith.constant 0.000000e+00 : f32
    %37 = vector.broadcast %cst_9 : f32 to vector<8x16x16xf32>
    %38 = arith.select %35, %33, %37 : vector<8x16x16xi1>, vector<8x16x16xf32>
    %39 = vector.broadcast %36 : f32 to vector<8x16x16xf32>
    %40 = arith.mulf %39, %38 : vector<8x16x16xf32>
    %41 = arith.addf %32, %40 : vector<8x16x16xf32>
    %c2_10 = arith.constant 2 : index
    %42 = memref.load %arg1[%c2_10] : memref<5xf32, #tpu.memory_space<smem>>
    %43 = vector.broadcast %42 : f32 to vector<8x16x16xf32>
    %44 = arith.mulf %43, %41 : vector<8x16x16xf32>
    %c2_i32_11 = arith.constant 2 : i32
    %45 = tpu.dynamic_rotate %41 by %c2_i32_11 dim 2 : vector<8x16x16xf32>, i32 -> vector<8x16x16xf32>
    %c2_i32_12 = arith.constant 2 : i32
    %46 = vector.broadcast %c2_i32_12 : i32 to vector<8x16x16xi32>
    %47 = arith.cmpi sge, %2, %46 : vector<8x16x16xi32>
    %c0_13 = arith.constant 0 : index
    %48 = memref.load %arg1[%c0_13] : memref<5xf32, #tpu.memory_space<smem>>
    %cst_14 = arith.constant 0.000000e+00 : f32
    %49 = vector.broadcast %cst_14 : f32 to vector<8x16x16xf32>
    %50 = arith.select %47, %45, %49 : vector<8x16x16xi1>, vector<8x16x16xf32>
    %51 = vector.broadcast %48 : f32 to vector<8x16x16xf32>
    %52 = arith.mulf %51, %50 : vector<8x16x16xf32>
    %53 = arith.addf %44, %52 : vector<8x16x16xf32>
    %c1_i32_15 = arith.constant 1 : i32
    %54 = tpu.dynamic_rotate %41 by %c1_i32_15 dim 2 : vector<8x16x16xf32>, i32 -> vector<8x16x16xf32>
    %c1_i32_16 = arith.constant 1 : i32
    %55 = vector.broadcast %c1_i32_16 : i32 to vector<8x16x16xi32>
    %56 = arith.cmpi sge, %2, %55 : vector<8x16x16xi32>
    %c1_17 = arith.constant 1 : index
    %57 = memref.load %arg1[%c1_17] : memref<5xf32, #tpu.memory_space<smem>>
    %cst_18 = arith.constant 0.000000e+00 : f32
    %58 = vector.broadcast %cst_18 : f32 to vector<8x16x16xf32>
    %59 = arith.select %56, %54, %58 : vector<8x16x16xi1>, vector<8x16x16xf32>
    %60 = vector.broadcast %57 : f32 to vector<8x16x16xf32>
    %61 = arith.mulf %60, %59 : vector<8x16x16xf32>
    %62 = arith.addf %53, %61 : vector<8x16x16xf32>
    %c15_i32_19 = arith.constant 15 : i32
    %63 = tpu.dynamic_rotate %41 by %c15_i32_19 dim 2 : vector<8x16x16xf32>, i32 -> vector<8x16x16xf32>
    %c15_i32_20 = arith.constant 15 : i32
    %64 = vector.broadcast %c15_i32_20 : i32 to vector<8x16x16xi32>
    %65 = arith.cmpi slt, %2, %64 : vector<8x16x16xi32>
    %c3_21 = arith.constant 3 : index
    %66 = memref.load %arg1[%c3_21] : memref<5xf32, #tpu.memory_space<smem>>
    %cst_22 = arith.constant 0.000000e+00 : f32
    %67 = vector.broadcast %cst_22 : f32 to vector<8x16x16xf32>
    %68 = arith.select %65, %63, %67 : vector<8x16x16xi1>, vector<8x16x16xf32>
    %69 = vector.broadcast %66 : f32 to vector<8x16x16xf32>
    %70 = arith.mulf %69, %68 : vector<8x16x16xf32>
    %71 = arith.addf %62, %70 : vector<8x16x16xf32>
    %c14_i32_23 = arith.constant 14 : i32
    %72 = tpu.dynamic_rotate %41 by %c14_i32_23 dim 2 : vector<8x16x16xf32>, i32 -> vector<8x16x16xf32>
    %c14_i32_24 = arith.constant 14 : i32
    %73 = vector.broadcast %c14_i32_24 : i32 to vector<8x16x16xi32>
    %74 = arith.cmpi slt, %2, %73 : vector<8x16x16xi32>
    %c4_25 = arith.constant 4 : index
    %75 = memref.load %arg1[%c4_25] : memref<5xf32, #tpu.memory_space<smem>>
    %cst_26 = arith.constant 0.000000e+00 : f32
    %76 = vector.broadcast %cst_26 : f32 to vector<8x16x16xf32>
    %77 = arith.select %74, %72, %76 : vector<8x16x16xi1>, vector<8x16x16xf32>
    %78 = vector.broadcast %75 : f32 to vector<8x16x16xf32>
    %79 = arith.mulf %78, %77 : vector<8x16x16xf32>
    %80 = arith.addf %71, %79 : vector<8x16x16xf32>
    %c0_27 = arith.constant 0 : index
    %c0_28 = arith.constant 0 : index
    %c0_29 = arith.constant 0 : index
    %81 = vector.load %arg3[%c0_27, %c0_28, %c0_29] : memref<8x16x16xf32, #tpu.memory_space<vmem>>, vector<8x16x16xf32>
    tpu.vector_store %arg3[%c0_27, %c0_28, %c0_29], %80 {strides = array<i32>} : memref<8x16x16xf32, #tpu.memory_space<vmem>>, vector<8x16x16xf32>,
    return
  }
  func.func @transform_0(%arg0: i32) -> i32 {
    %c0_i32 = arith.constant 0 : i32
    %c0_i32_0 = arith.constant 0 : i32
    return %c0_i32 : i32
  }
  func.func @transform_1(%arg0: i32) -> (i32, i32, i32) {
    %c0_i32 = arith.constant 0 : i32
    %c0_i32_0 = arith.constant 0 : i32
    %c0_i32_1 = arith.constant 0 : i32
    return %arg0, %c0_i32, %c0_i32_0 : i32, i32, i32
  }
  func.func @transform_2(%arg0: i32) -> (i32, i32, i32) {
    %c0_i32 = arith.constant 0 : i32
    %c0_i32_0 = arith.constant 0 : i32
    %c0_i32_1 = arith.constant 0 : i32
    return %arg0, %c0_i32, %c0_i32_0 : i32, i32, i32
  }
}

</mosaic_0001>

<llo_original>
// kernel: tpu_custom_call.1
$region0: #{tpu_custom_call.1}
  #allocation0 [shape = 'u32[]', space=smem, size = 0x4, offset = 0x4, fixed_abs, tag = 'smem constant byte address 0x4 - core index']
  #allocation1 [shape = 'u32[144,128]{1,0:T(1,128)}', space=vmem, size = 0x12000, scoped, tag = 'internal scratch']
  %s0 = inlined_call_operand.hbm [shape: f32[5], index: 0, kind: input, shape index: {}]
  %s1 = inlined_call_operand.hbm [shape: f32[8,16,16], index: 1, kind: input, shape index: {}]
  %s2 = inlined_call_operand.hbm [shape: f32[8,16,16], index: 2, kind: output, shape index: {}]
  %s3 = sld [smem:[#allocation0]]
  $region26: #{tpu_custom_call.1} parent=0
    _
  %s5 = ssub.s32 1, %s3
  %s6 = scalar_select 0, %s5, %s3
  $region1: #{tpu_custom_call.1} parent=0
    #allocation2 [shape = 'u8[512]{0}', space=smem, size = 0x200, scoped, tag = 'input window, operand 0, single buffered']
    #allocation3 [shape = 's32[1]{0}', space=sflag, size = 0x4, scoped, tag = 'scoped memory for tpu_custom_call.1']
    #allocation4 [shape = 's32[1]{0}', space=sflag, size = 0x4, scoped, tag = 'scoped memory for tpu_custom_call.1']
    #allocation5 [shape = 's32[1]{0}', space=sflag, size = 0x4, scoped, tag = 'scoped memory for tpu_custom_call.1']
    #allocation6 [shape = 'u8[65536]{0}', space=vmem, size = 0x10000, scoped, tag = 'input window, operand 1, single buffered']
    #allocation7 [shape = 'u8[65536]{0}', space=vmem, size = 0x10000, scoped, tag = 'output window, operand 0, single buffered']
    %7 = vsyncpa [#allocation5], 0
    %8 = vsyncpa [#allocation3], 0
    %9 = vsyncpa [#allocation4], 0
    // Predicated region
    $region2: #{tpu_custom_call.1} parent=1 // pred_check
      _
    $region3: #{tpu_custom_call.1} parent=1 // pred_check_branch
      %11 = sbr.rel (0) target = $region5
    $region4: #{tpu_custom_call.1} parent=1 // pred_region
      %s13 = ssub.s32 16, 16
      %14 = vsyncadd [#allocation5], %s13
      %17 = dma.hbm_to_smem %s0, 16, [#allocation2], [#allocation5]
    $region5: #{tpu_custom_call.1} parent=1 // pred_fallthru
      _
    // Predicated region
    $region6: #{tpu_custom_call.1} parent=1 // pred_check
      _
    $region7: #{tpu_custom_call.1} parent=1 // pred_check_branch
      %19 = sbr.rel (0) target = $region9
    $region8: #{tpu_custom_call.1} parent=1 // pred_region
      %s21 = ssub.s32 2048, 2048
      %22 = vsyncadd [#allocation3], %s21
      %s23 = sshll.u32 [#allocation6], 4
      %s24 = int_to_ptr.vmem [resolvable:$true] %s23
      %29 = dma.hbm_to_vmem [thread:$0]  %s1, 2048, %s24, [#allocation3], 128, 128, 8
    $region9: #{tpu_custom_call.1} parent=1 // pred_fallthru
      _
    // Predicated region
    $region10: #{tpu_custom_call.1} parent=1 // pred_check
      _
    $region11: #{tpu_custom_call.1} parent=1 // pred_check_branch
      %31 = sbr.rel (0) target = $region13
    $region12: #{tpu_custom_call.1} parent=1 // pred_region
      %32 = dma.done [#allocation5], 16
    $region13: #{tpu_custom_call.1} parent=1 // pred_fallthru
      _
    // Predicated region
    $region14: #{tpu_custom_call.1} parent=1 // pred_check
      _
    $region15: #{tpu_custom_call.1} parent=1 // pred_check_branch
      %34 = sbr.rel (0) target = $region17
    $region16: #{tpu_custom_call.1} parent=1 // pred_region
      %35 = dma.done [#allocation3], 2048
    $region17: #{tpu_custom_call.1} parent=1 // pred_fallthru
      _
    %36 = sfence
    %v37 = vld [vmem:[#allocation6] sm:$0xff]
    %v38 = vld [vmem:[#allocation6 + $0x8] sm:$0xff]
    %v39 = vld [vmem:[#allocation6 + $0x10] sm:$0xff]
    %v40 = vld [vmem:[#allocation6 + $0x18] sm:$0xff]
    %v41 = vld [vmem:[#allocation6 + $0x20] sm:$0xff]
    %v42 = vld [vmem:[#allocation6 + $0x28] sm:$0xff]
    %v43 = vld [vmem:[#allocation6 + $0x30] sm:$0xff]
    %v44 = vld [vmem:[#allocation6 + $0x38] sm:$0xff]
    %v45 = vld [vmem:[#allocation6 + $0x40] sm:$0xff]
    %v46 = vld [vmem:[#allocation6 + $0x48] sm:$0xff]
    %v47 = vld [vmem:[#allocation6 + $0x50] sm:$0xff]
    %v48 = vld [vmem:[#allocation6 + $0x58] sm:$0xff]
    %v49 = vld [vmem:[#allocation6 + $0x60] sm:$0xff]
    %v50 = vld [vmem:[#allocation6 + $0x68] sm:$0xff]
    %v51 = vld [vmem:[#allocation6 + $0x70] sm:$0xff]
    %v52 = vld [vmem:[#allocation6 + $0x78] sm:$0xff]
    %v53 = vlaneseq
    %v54 = vshrl.u32 %v53, 7
    %v55 = vadd.s32 %v54, 8
    %v56 = vlaneseq
    %v57 = vand.u32 %v56, 127
    %s58 = sld [smem:[#allocation2 + $0x2]]
    %v59 = vstv %s58
    %v60 = vmul.f32 %v59, %v37
    %v61 = vmul.f32 %v59, %v38
    %v62 = vmul.f32 %v59, %v39
    %v63 = vmul.f32 %v59, %v40
    %v64 = vmul.f32 %v59, %v41
    %v65 = vmul.f32 %v59, %v42
    %v66 = vmul.f32 %v59, %v43
    %v67 = vmul.f32 %v59, %v44
    %v68 = vmul.f32 %v59, %v45
    %v69 = vmul.f32 %v59, %v46
    %v70 = vmul.f32 %v59, %v47
    %v71 = vmul.f32 %v59, %v48
    %v72 = vmul.f32 %v59, %v49
    %v73 = vmul.f32 %v59, %v50
    %v74 = vmul.f32 %v59, %v51
    %v75 = vmul.f32 %v59, %v52
    %v76 = vrot.slane %v37, 6
    %v77 = vrot.slane %v39, 6
    %v78 = vrot.slane %v41, 6
    %v79 = vrot.slane %v43, 6
    %v80 = vrot.slane %v45, 6
    %v81 = vrot.slane %v47, 6
    %v82 = vrot.slane %v49, 6
    %v83 = vrot.slane %v51, 6
    %v84 = vrot.slane %v38, 6
    %v85 = vrot.slane %v40, 6
    %v86 = vrot.slane %v42, 6
    %v87 = vrot.slane %v44, 6
    %v88 = vrot.slane %v46, 6
    %v89 = vrot.slane %v48, 6
    %v90 = vrot.slane %v50, 6
    %v91 = vrot.slane %v52, 6
    %vm92 = vcmp.lt.s32.totalorder %v54, 2
    %v93 = vsel %vm92, %v76, %v84
    %v94 = vsel %vm92, %v77, %v85
    %v95 = vsel %vm92, %v78, %v86
    %v96 = vsel %vm92, %v79, %v87
    %v97 = vsel %vm92, %v80, %v88
    %v98 = vsel %vm92, %v81, %v89
    %v99 = vsel %vm92, %v82, %v90
    %v100 = vsel %vm92, %v83, %v91
    %v101 = vsel %vm92, %v84, %v76
    %v102 = vsel %vm92, %v85, %v77
    %v103 = vsel %vm92, %v86, %v78
    %v104 = vsel %vm92, %v87, %v79
    %v105 = vsel %vm92, %v88, %v80
    %v106 = vsel %vm92, %v89, %v81
    %v107 = vsel %vm92, %v90, %v82
    %v108 = vsel %vm92, %v91, %v83
    %vm109 = vcmp.ge.s32.totalorder %v54, 2
    %vm110 = vcmp.ge.s32.totalorder %v55, 2
    %s111 = sld [smem:[#allocation2]]
    %v112 = vsel %vm109, %v101, 0.0
    %v113 = vsel %vm110, %v93, 0.0
    %v114 = vsel %vm109, %v102, 0.0
    %v115 = vsel %vm110, %v94, 0.0
    %v116 = vsel %vm109, %v103, 0.0
    %v117 = vsel %vm110, %v95, 0.0
    %v118 = vsel %vm109, %v104, 0.0
    %v119 = vsel %vm110, %v96, 0.0
    %v120 = vsel %vm109, %v105, 0.0
    %v121 = vsel %vm110, %v97, 0.0
    %v122 = vsel %vm109, %v106, 0.0
    %v123 = vsel %vm110, %v98, 0.0
    %v124 = vsel %vm109, %v107, 0.0
    %v125 = vsel %vm110, %v99, 0.0
    %v126 = vsel %vm109, %v108, 0.0
    %v127 = vsel %vm110, %v100, 0.0
    %v128 = vstv %s111
    %v129 = vmul.f32 %v128, %v112
    %v130 = vmul.f32 %v128, %v113
    %v131 = vmul.f32 %v128, %v114
    %v132 = vmul.f32 %v128, %v115
    %v133 = vmul.f32 %v128, %v116
    %v134 = vmul.f32 %v128, %v117
    %v135 = vmul.f32 %v128, %v118
    %v136 = vmul.f32 %v128, %v119
    %v137 = vmul.f32 %v128, %v120
    %v138 = vmul.f32 %v128, %v121
    %v139 = vmul.f32 %v128, %v122
    %v140 = vmul.f32 %v128, %v123
    %v141 = vmul.f32 %v128, %v124
    %v142 = vmul.f32 %v128, %v125
    %v143 = vmul.f32 %v128, %v126
    %v144 = vmul.f32 %v128, %v127
    %v145 = vadd.f32 %v60, %v129
    %v146 = vadd.f32 %v61, %v130
    %v147 = vadd.f32 %v62, %v131
    %v148 = vadd.f32 %v63, %v132
    %v149 = vadd.f32 %v64, %v133
    %v150 = vadd.f32 %v65, %v134
    %v151 = vadd.f32 %v66, %v135
    %v152 = vadd.f32 %v67, %v136
    %v153 = vadd.f32 %v68, %v137
    %v154 = vadd.f32 %v69, %v138
    %v155 = vadd.f32 %v70, %v139
    %v156 = vadd.f32 %v71, %v140
    %v157 = vadd.f32 %v72, %v141
    %v158 = vadd.f32 %v73, %v142
    %v159 = vadd.f32 %v74, %v143
    %v160 = vadd.f32 %v75, %v144
    %v161 = vrot.slane %v37, 7
    %v162 = vrot.slane %v39, 7
    %v163 = vrot.slane %v41, 7
    %v164 = vrot.slane %v43, 7
    %v165 = vrot.slane %v45, 7
    %v166 = vrot.slane %v47, 7
    %v167 = vrot.slane %v49, 7
    %v168 = vrot.slane %v51, 7
    %v169 = vrot.slane %v38, 7
    %v170 = vrot.slane %v40, 7
    %v171 = vrot.slane %v42, 7
    %v172 = vrot.slane %v44, 7
    %v173 = vrot.slane %v46, 7
    %v174 = vrot.slane %v48, 7
    %v175 = vrot.slane %v50, 7
    %v176 = vrot.slane %v52, 7
    %vm177 = vcmp.lt.s32.totalorder %v54, 1
    %v178 = vsel %vm177, %v161, %v169
    %v179 = vsel %vm177, %v162, %v170
    %v180 = vsel %vm177, %v163, %v171
    %v181 = vsel %vm177, %v164, %v172
    %v182 = vsel %vm177, %v165, %v173
    %v183 = vsel %vm177, %v166, %v174
    %v184 = vsel %vm177, %v167, %v175
    %v185 = vsel %vm177, %v168, %v176
    %v186 = vsel %vm177, %v169, %v161
    %v187 = vsel %vm177, %v170, %v162
    %v188 = vsel %vm177, %v171, %v163
    %v189 = vsel %vm177, %v172, %v164
    %v190 = vsel %vm177, %v173, %v165
    %v191 = vsel %vm177, %v174, %v166
    %v192 = vsel %vm177, %v175, %v167
    %v193 = vsel %vm177, %v176, %v168
    %vm194 = vcmp.ge.s32.totalorder %v54, 1
    %vm195 = vcmp.ge.s32.totalorder %v55, 1
    %s196 = sld [smem:[#allocation2 + $0x1]]
    %v197 = vsel %vm194, %v186, 0.0
    %v198 = vsel %vm195, %v178, 0.0
    %v199 = vsel %vm194, %v187, 0.0
    %v200 = vsel %vm195, %v179, 0.0
    %v201 = vsel %vm194, %v188, 0.0
    %v202 = vsel %vm195, %v180, 0.0
    %v203 = vsel %vm194, %v189, 0.0
    %v204 = vsel %vm195, %v181, 0.0
    %v205 = vsel %vm194, %v190, 0.0
    %v206 = vsel %vm195, %v182, 0.0
    %v207 = vsel %vm194, %v191, 0.0
    %v208 = vsel %vm195, %v183, 0.0
    %v209 = vsel %vm194, %v192, 0.0
    %v210 = vsel %vm195, %v184, 0.0
    %v211 = vsel %vm194, %v193, 0.0
    %v212 = vsel %vm195, %v185, 0.0
    %v213 = vstv %s196
    %v214 = vmul.f32 %v213, %v197
    %v215 = vmul.f32 %v213, %v198
    %v216 = vmul.f32 %v213, %v199
    %v217 = vmul.f32 %v213, %v200
    %v218 = vmul.f32 %v213, %v201
    %v219 = vmul.f32 %v213, %v202
    %v220 = vmul.f32 %v213, %v203
    %v221 = vmul.f32 %v213, %v204
    %v222 = vmul.f32 %v213, %v205
    %v223 = vmul.f32 %v213, %v206
    %v224 = vmul.f32 %v213, %v207
    %v225 = vmul.f32 %v213, %v208
    %v226 = vmul.f32 %v213, %v209
    %v227 = vmul.f32 %v213, %v210
    %v228 = vmul.f32 %v213, %v211
    %v229 = vmul.f32 %v213, %v212
    %v230 = vadd.f32 %v145, %v214
    %v231 = vadd.f32 %v146, %v215
    %v232 = vadd.f32 %v147, %v216
    %v233 = vadd.f32 %v148, %v217
    %v234 = vadd.f32 %v149, %v218
    %v235 = vadd.f32 %v150, %v219
    %v236 = vadd.f32 %v151, %v220
    %v237 = vadd.f32 %v152, %v221
    %v238 = vadd.f32 %v153, %v222
    %v239 = vadd.f32 %v154, %v223
    %v240 = vadd.f32 %v155, %v224
    %v241 = vadd.f32 %v156, %v225
    %v242 = vadd.f32 %v157, %v226
    %v243 = vadd.f32 %v158, %v227
    %v244 = vadd.f32 %v159, %v228
    %v245 = vadd.f32 %v160, %v229
    %v246 = vrot.slane %v37, 1
    %v247 = vrot.slane %v39, 1
    %v248 = vrot.slane %v41, 1
    %v249 = vrot.slane %v43, 1
    %v250 = vrot.slane %v45, 1
    %v251 = vrot.slane %v47, 1
    %v252 = vrot.slane %v49, 1
    %v253 = vrot.slane %v51, 1
    %v254 = vrot.slane %v38, 1
    %v255 = vrot.slane %v40, 1
    %v256 = vrot.slane %v42, 1
    %v257 = vrot.slane %v44, 1
    %v258 = vrot.slane %v46, 1
    %v259 = vrot.slane %v48, 1
    %v260 = vrot.slane %v50, 1
    %v261 = vrot.slane %v52, 1
    %vm262 = vcmp.lt.s32.totalorder %v54, 7
    %v263 = vsel %vm262, %v246, %v254
    %v264 = vsel %vm262, %v247, %v255
    %v265 = vsel %vm262, %v248, %v256
    %v266 = vsel %vm262, %v249, %v257
    %v267 = vsel %vm262, %v250, %v258
    %v268 = vsel %vm262, %v251, %v259
    %v269 = vsel %vm262, %v252, %v260
    %v270 = vsel %vm262, %v253, %v261
    %v271 = vsel %vm262, %v254, %v246
    %v272 = vsel %vm262, %v255, %v247
    %v273 = vsel %vm262, %v256, %v248
    %v274 = vsel %vm262, %v257, %v249
    %v275 = vsel %vm262, %v258, %v250
    %v276 = vsel %vm262, %v259, %v251
    %v277 = vsel %vm262, %v260, %v252
    %v278 = vsel %vm262, %v261, %v253
    %vm279 = vcmp.lt.s32.totalorder %v54, 15
    %vm280 = vcmp.lt.s32.totalorder %v55, 15
    %s281 = sld [smem:[#allocation2 + $0x3]]
    %v282 = vsel %vm279, %v263, 0.0
    %v283 = vsel %vm280, %v271, 0.0
    %v284 = vsel %vm279, %v264, 0.0
    %v285 = vsel %vm280, %v272, 0.0
    %v286 = vsel %vm279, %v265, 0.0
    %v287 = vsel %vm280, %v273, 0.0
    %v288 = vsel %vm279, %v266, 0.0
    %v289 = vsel %vm280, %v274, 0.0
    %v290 = vsel %vm279, %v267, 0.0
    %v291 = vsel %vm280, %v275, 0.0
    %v292 = vsel %vm279, %v268, 0.0
    %v293 = vsel %vm280, %v276, 0.0
    %v294 = vsel %vm279, %v269, 0.0
    %v295 = vsel %vm280, %v277, 0.0
    %v296 = vsel %vm279, %v270, 0.0
    %v297 = vsel %vm280, %v278, 0.0
    %v298 = vstv %s281
    %v299 = vmul.f32 %v298, %v282
    %v300 = vmul.f32 %v298, %v283
    %v301 = vmul.f32 %v298, %v284
    %v302 = vmul.f32 %v298, %v285
    %v303 = vmul.f32 %v298, %v286
    %v304 = vmul.f32 %v298, %v287
    %v305 = vmul.f32 %v298, %v288
    %v306 = vmul.f32 %v298, %v289
    %v307 = vmul.f32 %v298, %v290
    %v308 = vmul.f32 %v298, %v291
    %v309 = vmul.f32 %v298, %v292
    %v310 = vmul.f32 %v298, %v293
    %v311 = vmul.f32 %v298, %v294
    %v312 = vmul.f32 %v298, %v295
    %v313 = vmul.f32 %v298, %v296
    %v314 = vmul.f32 %v298, %v297
    %v315 = vadd.f32 %v230, %v299
    %v316 = vadd.f32 %v231, %v300
    %v317 = vadd.f32 %v232, %v301
    %v318 = vadd.f32 %v233, %v302
    %v319 = vadd.f32 %v234, %v303
    %v320 = vadd.f32 %v235, %v304
    %v321 = vadd.f32 %v236, %v305
    %v322 = vadd.f32 %v237, %v306
    %v323 = vadd.f32 %v238, %v307
    %v324 = vadd.f32 %v239, %v308
    %v325 = vadd.f32 %v240, %v309
    %v326 = vadd.f32 %v241, %v310
    %v327 = vadd.f32 %v242, %v311
    %v328 = vadd.f32 %v243, %v312
    %v329 = vadd.f32 %v244, %v313
    %v330 = vadd.f32 %v245, %v314
    %v331 = vrot.slane %v37, 2
    %v332 = vrot.slane %v39, 2
    %v333 = vrot.slane %v41, 2
    %v334 = vrot.slane %v43, 2
    %v335 = vrot.slane %v45, 2
    %v336 = vrot.slane %v47, 2
    %v337 = vrot.slane %v49, 2
    %v338 = vrot.slane %v51, 2
    %v339 = vrot.slane %v38, 2
    %v340 = vrot.slane %v40, 2
    %v341 = vrot.slane %v42, 2
    %v342 = vrot.slane %v44, 2
    %v343 = vrot.slane %v46, 2
    %v344 = vrot.slane %v48, 2
    %v345 = vrot.slane %v50, 2
    %v346 = vrot.slane %v52, 2
    %vm347 = vcmp.lt.s32.totalorder %v54, 6
    %v348 = vsel %vm347, %v331, %v339
    %v349 = vsel %vm347, %v332, %v340
    %v350 = vsel %vm347, %v333, %v341
    %v351 = vsel %vm347, %v334, %v342
    %v352 = vsel %vm347, %v335, %v343
    %v353 = vsel %vm347, %v336, %v344
    %v354 = vsel %vm347, %v337, %v345
    %v355 = vsel %vm347, %v338, %v346
    %v356 = vsel %vm347, %v339, %v331
    %v357 = vsel %vm347, %v340, %v332
    %v358 = vsel %vm347, %v341, %v333
    %v359 = vsel %vm347, %v342, %v334
    %v360 = vsel %vm347, %v343, %v335
    %v361 = vsel %vm347, %v344, %v336
    %v362 = vsel %vm347, %v345, %v337
    %v363 = vsel %vm347, %v346, %v338
    %vm364 = vcmp.lt.s32.totalorder %v54, 14
    %vm365 = vcmp.lt.s32.totalorder %v55, 14
    %s366 = sld [smem:[#allocation2 + $0x4]]
    %v367 = vsel %vm364, %v348, 0.0
    %v368 = vsel %vm365, %v356, 0.0
    %v369 = vsel %vm364, %v349, 0.0
    %v370 = vsel %vm365, %v357, 0.0
    %v371 = vsel %vm364, %v350, 0.0
    %v372 = vsel %vm365, %v358, 0.0
    %v373 = vsel %vm364, %v351, 0.0
    %v374 = vsel %vm365, %v359, 0.0
    %v375 = vsel %vm364, %v352, 0.0
    %v376 = vsel %vm365, %v360, 0.0
    %v377 = vsel %vm364, %v353, 0.0
    %v378 = vsel %vm365, %v361, 0.0
    %v379 = vsel %vm364, %v354, 0.0
    %v380 = vsel %vm365, %v362, 0.0
    %v381 = vsel %vm364, %v355, 0.0
    %v382 = vsel %vm365, %v363, 0.0
    %v383 = vstv %s366
    %v384 = vmul.f32 %v383, %v367
    %v385 = vmul.f32 %v383, %v368
    %v386 = vmul.f32 %v383, %v369
    %v387 = vmul.f32 %v383, %v370
    %v388 = vmul.f32 %v383, %v371
    %v389 = vmul.f32 %v383, %v372
    %v390 = vmul.f32 %v383, %v373
    %v391 = vmul.f32 %v383, %v374
    %v392 = vmul.f32 %v383, %v375
    %v393 = vmul.f32 %v383, %v376
    %v394 = vmul.f32 %v383, %v377
    %v395 = vmul.f32 %v383, %v378
    %v396 = vmul.f32 %v383, %v379
    %v397 = vmul.f32 %v383, %v380
    %v398 = vmul.f32 %v383, %v381
    %v399 = vmul.f32 %v383, %v382
    %v400 = vadd.f32 %v315, %v384
    %v401 = vadd.f32 %v316, %v385
    %v402 = vadd.f32 %v317, %v386
    %v403 = vadd.f32 %v318, %v387
    %v404 = vadd.f32 %v319, %v388
    %v405 = vadd.f32 %v320, %v389
    %v406 = vadd.f32 %v321, %v390
    %v407 = vadd.f32 %v322, %v391
    %v408 = vadd.f32 %v323, %v392
    %v409 = vadd.f32 %v324, %v393
    %v410 = vadd.f32 %v325, %v394
    %v411 = vadd.f32 %v326, %v395
    %v412 = vadd.f32 %v327, %v396
    %v413 = vadd.f32 %v328, %v397
    %v414 = vadd.f32 %v329, %v398
    %v415 = vadd.f32 %v330, %v399
    %v416 = vmul.f32 %v59, %v400
    %v417 = vmul.f32 %v59, %v401
    %v418 = vmul.f32 %v59, %v402
    %v419 = vmul.f32 %v59, %v403
    %v420 = vmul.f32 %v59, %v404
    %v421 = vmul.f32 %v59, %v405
    %v422 = vmul.f32 %v59, %v406
    %v423 = vmul.f32 %v59, %v407
    %v424 = vmul.f32 %v59, %v408
    %v425 = vmul.f32 %v59, %v409
    %v426 = vmul.f32 %v59, %v410
    %v427 = vmul.f32 %v59, %v411
    %v428 = vmul.f32 %v59, %v412
    %v429 = vmul.f32 %v59, %v413
    %v430 = vmul.f32 %v59, %v414
    %v431 = vmul.f32 %v59, %v415
    %vm432 = vcmask 1047680
    %433 = vrot.lane.b32.xlu0 %v400, 16
    %v434 = vpop.permute.xlu0 %433
    %v435 = vsel %vm432, %v434, %v400
    %436 = vrot.lane.b32.xlu0 %v401, 16
    %v437 = vpop.permute.xlu0 %436
    %v438 = vsel %vm432, %v437, %v401
    %439 = vrot.lane.b32.xlu0 %v402, 16
    %v440 = vpop.permute.xlu0 %439
    %v441 = vsel %vm432, %v440, %v402
    %442 = vrot.lane.b32.xlu0 %v403, 16
    %v443 = vpop.permute.xlu0 %442
    %v444 = vsel %vm432, %v443, %v403
    %445 = vrot.lane.b32.xlu0 %v404, 16
    %v446 = vpop.permute.xlu0 %445
    %v447 = vsel %vm432, %v446, %v404
    %448 = vrot.lane.b32.xlu0 %v405, 16
    %v449 = vpop.permute.xlu0 %448
    %v450 = vsel %vm432, %v449, %v405
    %451 = vrot.lane.b32.xlu0 %v406, 16
    %v452 = vpop.permute.xlu0 %451
    %v453 = vsel %vm432, %v452, %v406
    %454 = vrot.lane.b32.xlu0 %v407, 16
    %v455 = vpop.permute.xlu0 %454
    %v456 = vsel %vm432, %v455, %v407
    %457 = vrot.lane.b32.xlu0 %v408, 16
    %v458 = vpop.permute.xlu0 %457
    %v459 = vsel %vm432, %v458, %v408
    %460 = vrot.lane.b32.xlu0 %v409, 16
    %v461 = vpop.permute.xlu0 %460
    %v462 = vsel %vm432, %v461, %v409
    %463 = vrot.lane.b32.xlu0 %v410, 16
    %v464 = vpop.permute.xlu0 %463
    %v465 = vsel %vm432, %v464, %v410
    %466 = vrot.lane.b32.xlu0 %v411, 16
    %v467 = vpop.permute.xlu0 %466
    %v468 = vsel %vm432, %v467, %v411
    %469 = vrot.lane.b32.xlu0 %v412, 16
    %v470 = vpop.permute.xlu0 %469
    %v471 = vsel %vm432, %v470, %v412
    %472 = vrot.lane.b32.xlu0 %v413, 16
    %v473 = vpop.permute.xlu0 %472
    %v474 = vsel %vm432, %v473, %v413
    %475 = vrot.lane.b32.xlu0 %v414, 16
    %v476 = vpop.permute.xlu0 %475
    %v477 = vsel %vm432, %v476, %v414
    %478 = vrot.lane.b32.xlu0 %v415, 16
    %v479 = vpop.permute.xlu0 %478
    %v480 = vsel %vm432, %v479, %v415
    %481 = vrot.lane.b32.xlu0 %v435, 16
    %v482 = vpop.permute.xlu0 %481
    %483 = vrot.lane.b32.xlu0 %v438, 16
    %v484 = vpop.permute.xlu0 %483
    %485 = vrot.lane.b32.xlu0 %v441, 16
    %v486 = vpop.permute.xlu0 %485
    %487 = vrot.lane.b32.xlu0 %v444, 16
    %v488 = vpop.permute.xlu0 %487
    %489 = vrot.lane.b32.xlu0 %v447, 16
    %v490 = vpop.permute.xlu0 %489
    %491 = vrot.lane.b32.xlu0 %v450, 16
    %v492 = vpop.permute.xlu0 %491
    %493 = vrot.lane.b32.xlu0 %v453, 16
    %v494 = vpop.permute.xlu0 %493
    %495 = vrot.lane.b32.xlu0 %v456, 16
    %v496 = vpop.permute.xlu0 %495
    %497 = vrot.lane.b32.xlu0 %v459, 16
    %v498 = vpop.permute.xlu0 %497
    %499 = vrot.lane.b32.xlu0 %v462, 16
    %v500 = vpop.permute.xlu0 %499
    %501 = vrot.lane.b32.xlu0 %v465, 16
    %v502 = vpop.permute.xlu0 %501
    %503 = vrot.lane.b32.xlu0 %v468, 16
    %v504 = vpop.permute.xlu0 %503
    %505 = vrot.lane.b32.xlu0 %v471, 16
    %v506 = vpop.permute.xlu0 %505
    %507 = vrot.lane.b32.xlu0 %v474, 16
    %v508 = vpop.permute.xlu0 %507
    %509 = vrot.lane.b32.xlu0 %v477, 16
    %v510 = vpop.permute.xlu0 %509
    %511 = vrot.lane.b32.xlu0 %v480, 16
    %v512 = vpop.permute.xlu0 %511
    %v513 = vsel %vm432, %v482, %v400
    %v514 = vsel %vm432, %v484, %v401
    %v515 = vsel %vm432, %v486, %v402
    %v516 = vsel %vm432, %v488, %v403
    %v517 = vsel %vm432, %v490, %v404
    %v518 = vsel %vm432, %v492, %v405
    %v519 = vsel %vm432, %v494, %v406
    %v520 = vsel %vm432, %v496, %v407
    %v521 = vsel %vm432, %v498, %v408
    %v522 = vsel %vm432, %v500, %v409
    %v523 = vsel %vm432, %v502, %v410
    %v524 = vsel %vm432, %v504, %v411
    %v525 = vsel %vm432, %v506, %v412
    %v526 = vsel %vm432, %v508, %v413
    %v527 = vsel %vm432, %v510, %v414
    %v528 = vsel %vm432, %v512, %v415
    %vm529 = vcmp.ge.s32.totalorder %v57, 2
    %546 = vrot.lane.b32.xlu0 %v513, 114
    %v547 = vpop.permute.xlu0 %546
    %548 = vrot.lane.b32.xlu0 %v514, 114
    %v549 = vpop.permute.xlu0 %548
    %550 = vrot.lane.b32.xlu0 %v515, 114
    %v551 = vpop.permute.xlu0 %550
    %552 = vrot.lane.b32.xlu0 %v516, 114
    %v553 = vpop.permute.xlu0 %552
    %554 = vrot.lane.b32.xlu0 %v517, 114
    %v555 = vpop.permute.xlu0 %554
    %556 = vrot.lane.b32.xlu0 %v518, 114
    %v557 = vpop.permute.xlu0 %556
    %558 = vrot.lane.b32.xlu0 %v519, 114
    %v559 = vpop.permute.xlu0 %558
    %560 = vrot.lane.b32.xlu0 %v520, 114
    %v561 = vpop.permute.xlu0 %560
    %562 = vrot.lane.b32.xlu0 %v521, 114
    %v563 = vpop.permute.xlu0 %562
    %564 = vrot.lane.b32.xlu0 %v522, 114
    %v565 = vpop.permute.xlu0 %564
    %566 = vrot.lane.b32.xlu0 %v523, 114
    %v567 = vpop.permute.xlu0 %566
    %568 = vrot.lane.b32.xlu0 %v524, 114
    %v569 = vpop.permute.xlu0 %568
    %570 = vrot.lane.b32.xlu0 %v525, 114
    %v571 = vpop.permute.xlu0 %570
    %572 = vrot.lane.b32.xlu0 %v526, 114
    %v573 = vpop.permute.xlu0 %572
    %574 = vrot.lane.b32.xlu0 %v527, 114
    %v575 = vpop.permute.xlu0 %574
    %576 = vrot.lane.b32.xlu0 %v528, 114
    %v577 = vpop.permute.xlu0 %576
    %v594 = vsel %vm529, %v547, 0.0
    %v595 = vsel %vm529, %v549, 0.0
    %v596 = vsel %vm529, %v551, 0.0
    %v597 = vsel %vm529, %v553, 0.0
    %v598 = vsel %vm529, %v555, 0.0
    %v599 = vsel %vm529, %v557, 0.0
    %v600 = vsel %vm529, %v559, 0.0
    %v601 = vsel %vm529, %v561, 0.0
    %v602 = vsel %vm529, %v563, 0.0
    %v603 = vsel %vm529, %v565, 0.0
    %v604 = vsel %vm529, %v567, 0.0
    %v605 = vsel %vm529, %v569, 0.0
    %v606 = vsel %vm529, %v571, 0.0
    %v607 = vsel %vm529, %v573, 0.0
    %v608 = vsel %vm529, %v575, 0.0
    %v609 = vsel %vm529, %v577, 0.0
    %v610 = vmul.f32 %v128, %v594
    %v611 = vmul.f32 %v128, %v595
    %v612 = vmul.f32 %v128, %v596
    %v613 = vmul.f32 %v128, %v597
    %v614 = vmul.f32 %v128, %v598
    %v615 = vmul.f32 %v128, %v599
    %v616 = vmul.f32 %v128, %v600
    %v617 = vmul.f32 %v128, %v601
    %v618 = vmul.f32 %v128, %v602
    %v619 = vmul.f32 %v128, %v603
    %v620 = vmul.f32 %v128, %v604
    %v621 = vmul.f32 %v128, %v605
    %v622 = vmul.f32 %v128, %v606
    %v623 = vmul.f32 %v128, %v607
    %v624 = vmul.f32 %v128, %v608
    %v625 = vmul.f32 %v128, %v609
    %v626 = vadd.f32 %v416, %v610
    %v627 = vadd.f32 %v417, %v611
    %v628 = vadd.f32 %v418, %v612
    %v629 = vadd.f32 %v419, %v613
    %v630 = vadd.f32 %v420, %v614
    %v631 = vadd.f32 %v421, %v615
    %v632 = vadd.f32 %v422, %v616
    %v633 = vadd.f32 %v423, %v617
    %v634 = vadd.f32 %v424, %v618
    %v635 = vadd.f32 %v425, %v619
    %v636 = vadd.f32 %v426, %v620
    %v637 = vadd.f32 %v427, %v621
    %v638 = vadd.f32 %v428, %v622
    %v639 = vadd.f32 %v429, %v623
    %v640 = vadd.f32 %v430, %v624
    %v641 = vadd.f32 %v431, %v625
    %vm642 = vcmp.ge.s32.totalorder %v57, 1
    %643 = vrot.lane.b32.xlu0 %v513, 113
    %v644 = vpop.permute.xlu0 %643
    %645 = vrot.lane.b32.xlu0 %v514, 113
    %v646 = vpop.permute.xlu0 %645
    %647 = vrot.lane.b32.xlu0 %v515, 113
    %v648 = vpop.permute.xlu0 %647
    %649 = vrot.lane.b32.xlu0 %v516, 113
    %v650 = vpop.permute.xlu0 %649
    %651 = vrot.lane.b32.xlu0 %v517, 113
    %v652 = vpop.permute.xlu0 %651
    %653 = vrot.lane.b32.xlu0 %v518, 113
    %v654 = vpop.permute.xlu0 %653
    %655 = vrot.lane.b32.xlu0 %v519, 113
    %v656 = vpop.permute.xlu0 %655
    %657 = vrot.lane.b32.xlu0 %v520, 113
    %v658 = vpop.permute.xlu0 %657
    %659 = vrot.lane.b32.xlu0 %v521, 113
    %v660 = vpop.permute.xlu0 %659
    %661 = vrot.lane.b32.xlu0 %v522, 113
    %v662 = vpop.permute.xlu0 %661
    %663 = vrot.lane.b32.xlu0 %v523, 113
    %v664 = vpop.permute.xlu0 %663
    %665 = vrot.lane.b32.xlu0 %v524, 113
    %v666 = vpop.permute.xlu0 %665
    %667 = vrot.lane.b32.xlu0 %v525, 113
    %v668 = vpop.permute.xlu0 %667
    %669 = vrot.lane.b32.xlu0 %v526, 113
    %v670 = vpop.permute.xlu0 %669
    %671 = vrot.lane.b32.xlu0 %v527, 113
    %v672 = vpop.permute.xlu0 %671
    %673 = vrot.lane.b32.xlu0 %v528, 113
    %v674 = vpop.permute.xlu0 %673
    %v691 = vsel %vm642, %v644, 0.0
    %v692 = vsel %vm642, %v646, 0.0
    %v693 = vsel %vm642, %v648, 0.0
    %v694 = vsel %vm642, %v650, 0.0
    %v695 = vsel %vm642, %v652, 0.0
    %v696 = vsel %vm642, %v654, 0.0
    %v697 = vsel %vm642, %v656, 0.0
    %v698 = vsel %vm642, %v658, 0.0
    %v699 = vsel %vm642, %v660, 0.0
    %v700 = vsel %vm642, %v662, 0.0
    %v701 = vsel %vm642, %v664, 0.0
    %v702 = vsel %vm642, %v666, 0.0
    %v703 = vsel %vm642, %v668, 0.0
    %v704 = vsel %vm642, %v670, 0.0
    %v705 = vsel %vm642, %v672, 0.0
    %v706 = vsel %vm642, %v674, 0.0
    %v707 = vmul.f32 %v213, %v691
    %v708 = vmul.f32 %v213, %v692
    %v709 = vmul.f32 %v213, %v693
    %v710 = vmul.f32 %v213, %v694
    %v711 = vmul.f32 %v213, %v695
    %v712 = vmul.f32 %v213, %v696
    %v713 = vmul.f32 %v213, %v697
    %v714 = vmul.f32 %v213, %v698
    %v715 = vmul.f32 %v213, %v699
    %v716 = vmul.f32 %v213, %v700
    %v717 = vmul.f32 %v213, %v701
    %v718 = vmul.f32 %v213, %v702
    %v719 = vmul.f32 %v213, %v703
    %v720 = vmul.f32 %v213, %v704
    %v721 = vmul.f32 %v213, %v705
    %v722 = vmul.f32 %v213, %v706
    %v723 = vadd.f32 %v626, %v707
    %v724 = vadd.f32 %v627, %v708
    %v725 = vadd.f32 %v628, %v709
    %v726 = vadd.f32 %v629, %v710
    %v727 = vadd.f32 %v630, %v711
    %v728 = vadd.f32 %v631, %v712
    %v729 = vadd.f32 %v632, %v713
    %v730 = vadd.f32 %v633, %v714
    %v731 = vadd.f32 %v634, %v715
    %v732 = vadd.f32 %v635, %v716
    %v733 = vadd.f32 %v636, %v717
    %v734 = vadd.f32 %v637, %v718
    %v735 = vadd.f32 %v638, %v719
    %v736 = vadd.f32 %v639, %v720
    %v737 = vadd.f32 %v640, %v721
    %v738 = vadd.f32 %v641, %v722
    %vm739 = vcmp.lt.s32.totalorder %v57, 15
    %740 = vrot.lane.b32.xlu0 %v513, 127
    %v741 = vpop.permute.xlu0 %740
    %742 = vrot.lane.b32.xlu0 %v514, 127
    %v743 = vpop.permute.xlu0 %742
    %744 = vrot.lane.b32.xlu0 %v515, 127
    %v745 = vpop.permute.xlu0 %744
    %746 = vrot.lane.b32.xlu0 %v516, 127
    %v747 = vpop.permute.xlu0 %746
    %748 = vrot.lane.b32.xlu0 %v517, 127
    %v749 = vpop.permute.xlu0 %748
    %750 = vrot.lane.b32.xlu0 %v518, 127
    %v751 = vpop.permute.xlu0 %750
    %752 = vrot.lane.b32.xlu0 %v519, 127
    %v753 = vpop.permute.xlu0 %752
    %754 = vrot.lane.b32.xlu0 %v520, 127
    %v755 = vpop.permute.xlu0 %754
    %756 = vrot.lane.b32.xlu0 %v521, 127
    %v757 = vpop.permute.xlu0 %756
    %758 = vrot.lane.b32.xlu0 %v522, 127
    %v759 = vpop.permute.xlu0 %758
    %760 = vrot.lane.b32.xlu0 %v523, 127
    %v761 = vpop.permute.xlu0 %760
    %762 = vrot.lane.b32.xlu0 %v524, 127
    %v763 = vpop.permute.xlu0 %762
    %764 = vrot.lane.b32.xlu0 %v525, 127
    %v765 = vpop.permute.xlu0 %764
    %766 = vrot.lane.b32.xlu0 %v526, 127
    %v767 = vpop.permute.xlu0 %766
    %768 = vrot.lane.b32.xlu0 %v527, 127
    %v769 = vpop.permute.xlu0 %768
    %770 = vrot.lane.b32.xlu0 %v528, 127
    %v771 = vpop.permute.xlu0 %770
    %v788 = vsel %vm739, %v741, 0.0
    %v789 = vsel %vm739, %v743, 0.0
    %v790 = vsel %vm739, %v745, 0.0
    %v791 = vsel %vm739, %v747, 0.0
    %v792 = vsel %vm739, %v749, 0.0
    %v793 = vsel %vm739, %v751, 0.0
    %v794 = vsel %vm739, %v753, 0.0
    %v795 = vsel %vm739, %v755, 0.0
    %v796 = vsel %vm739, %v757, 0.0
    %v797 = vsel %vm739, %v759, 0.0
    %v798 = vsel %vm739, %v761, 0.0
    %v799 = vsel %vm739, %v763, 0.0
    %v800 = vsel %vm739, %v765, 0.0
    %v801 = vsel %vm739, %v767, 0.0
    %v802 = vsel %vm739, %v769, 0.0
    %v803 = vsel %vm739, %v771, 0.0
    %v804 = vmul.f32 %v298, %v788
    %v805 = vmul.f32 %v298, %v789
    %v806 = vmul.f32 %v298, %v790
    %v807 = vmul.f32 %v298, %v791
    %v808 = vmul.f32 %v298, %v792
    %v809 = vmul.f32 %v298, %v793
    %v810 = vmul.f32 %v298, %v794
    %v811 = vmul.f32 %v298, %v795
    %v812 = vmul.f32 %v298, %v796
    %v813 = vmul.f32 %v298, %v797
    %v814 = vmul.f32 %v298, %v798
    %v815 = vmul.f32 %v298, %v799
    %v816 = vmul.f32 %v298, %v800
    %v817 = vmul.f32 %v298, %v801
    %v818 = vmul.f32 %v298, %v802
    %v819 = vmul.f32 %v298, %v803
    %v820 = vadd.f32 %v723, %v804
    %v821 = vadd.f32 %v724, %v805
    %v822 = vadd.f32 %v725, %v806
    %v823 = vadd.f32 %v726, %v807
    %v824 = vadd.f32 %v727, %v808
    %v825 = vadd.f32 %v728, %v809
    %v826 = vadd.f32 %v729, %v810
    %v827 = vadd.f32 %v730, %v811
    %v828 = vadd.f32 %v731, %v812
    %v829 = vadd.f32 %v732, %v813
    %v830 = vadd.f32 %v733, %v814
    %v831 = vadd.f32 %v734, %v815
    %v832 = vadd.f32 %v735, %v816
    %v833 = vadd.f32 %v736, %v817
    %v834 = vadd.f32 %v737, %v818
    %v835 = vadd.f32 %v738, %v819
    %vm836 = vcmp.lt.s32.totalorder %v57, 14
    %837 = vrot.lane.b32.xlu0 %v513, 126
    %v838 = vpop.permute.xlu0 %837
    %839 = vrot.lane.b32.xlu0 %v514, 126
    %v840 = vpop.permute.xlu0 %839
    %841 = vrot.lane.b32.xlu0 %v515, 126
    %v842 = vpop.permute.xlu0 %841
    %843 = vrot.lane.b32.xlu0 %v516, 126
    %v844 = vpop.permute.xlu0 %843
    %845 = vrot.lane.b32.xlu0 %v517, 126
    %v846 = vpop.permute.xlu0 %845
    %847 = vrot.lane.b32.xlu0 %v518, 126
    %v848 = vpop.permute.xlu0 %847
    %849 = vrot.lane.b32.xlu0 %v519, 126
    %v850 = vpop.permute.xlu0 %849
    %851 = vrot.lane.b32.xlu0 %v520, 126
    %v852 = vpop.permute.xlu0 %851
    %853 = vrot.lane.b32.xlu0 %v521, 126
    %v854 = vpop.permute.xlu0 %853
    %855 = vrot.lane.b32.xlu0 %v522, 126
    %v856 = vpop.permute.xlu0 %855
    %857 = vrot.lane.b32.xlu0 %v523, 126
    %v858 = vpop.permute.xlu0 %857
    %859 = vrot.lane.b32.xlu0 %v524, 126
    %v860 = vpop.permute.xlu0 %859
    %861 = vrot.lane.b32.xlu0 %v525, 126
    %v862 = vpop.permute.xlu0 %861
    %863 = vrot.lane.b32.xlu0 %v526, 126
    %v864 = vpop.permute.xlu0 %863
    %865 = vrot.lane.b32.xlu0 %v527, 126
    %v866 = vpop.permute.xlu0 %865
    %867 = vrot.lane.b32.xlu0 %v528, 126
    %v868 = vpop.permute.xlu0 %867
    %v885 = vsel %vm836, %v838, 0.0
    %v886 = vsel %vm836, %v840, 0.0
    %v887 = vsel %vm836, %v842, 0.0
    %v888 = vsel %vm836, %v844, 0.0
    %v889 = vsel %vm836, %v846, 0.0
    %v890 = vsel %vm836, %v848, 0.0
    %v891 = vsel %vm836, %v850, 0.0
    %v892 = vsel %vm836, %v852, 0.0
    %v893 = vsel %vm836, %v854, 0.0
    %v894 = vsel %vm836, %v856, 0.0
    %v895 = vsel %vm836, %v858, 0.0
    %v896 = vsel %vm836, %v860, 0.0
    %v897 = vsel %vm836, %v862, 0.0
    %v898 = vsel %vm836, %v864, 0.0
    %v899 = vsel %vm836, %v866, 0.0
    %v900 = vsel %vm836, %v868, 0.0
    %v901 = vmul.f32 %v383, %v885
    %v902 = vmul.f32 %v383, %v886
    %v903 = vmul.f32 %v383, %v887
    %v904 = vmul.f32 %v383, %v888
    %v905 = vmul.f32 %v383, %v889
    %v906 = vmul.f32 %v383, %v890
    %v907 = vmul.f32 %v383, %v891
    %v908 = vmul.f32 %v383, %v892
    %v909 = vmul.f32 %v383, %v893
    %v910 = vmul.f32 %v383, %v894
    %v911 = vmul.f32 %v383, %v895
    %v912 = vmul.f32 %v383, %v896
    %v913 = vmul.f32 %v383, %v897
    %v914 = vmul.f32 %v383, %v898
    %v915 = vmul.f32 %v383, %v899
    %v916 = vmul.f32 %v383, %v900
    %v917 = vadd.f32 %v820, %v901
    %v918 = vadd.f32 %v821, %v902
    %v919 = vadd.f32 %v822, %v903
    %v920 = vadd.f32 %v823, %v904
    %v921 = vadd.f32 %v824, %v905
    %v922 = vadd.f32 %v825, %v906
    %v923 = vadd.f32 %v826, %v907
    %v924 = vadd.f32 %v827, %v908
    %v925 = vadd.f32 %v828, %v909
    %v926 = vadd.f32 %v829, %v910
    %v927 = vadd.f32 %v830, %v911
    %v928 = vadd.f32 %v831, %v912
    %v929 = vadd.f32 %v832, %v913
    %v930 = vadd.f32 %v833, %v914
    %v931 = vadd.f32 %v834, %v915
    %v932 = vadd.f32 %v835, %v916
    %vm933 = vcmask 130048
    %934 = vst.msk [vmem:[#allocation7] sm:$0xff] %vm933, %v917
    %935 = vst.msk [vmem:[#allocation7 + $0x8] sm:$0xff] %vm933, %v918
    %936 = vst.msk [vmem:[#allocation7 + $0x10] sm:$0xff] %vm933, %v919
    %937 = vst.msk [vmem:[#allocation7 + $0x18] sm:$0xff] %vm933, %v920
    %938 = vst.msk [vmem:[#allocation7 + $0x20] sm:$0xff] %vm933, %v921
    %939 = vst.msk [vmem:[#allocation7 + $0x28] sm:$0xff] %vm933, %v922
    %940 = vst.msk [vmem:[#allocation7 + $0x30] sm:$0xff] %vm933, %v923
    %941 = vst.msk [vmem:[#allocation7 + $0x38] sm:$0xff] %vm933, %v924
    %942 = vst.msk [vmem:[#allocation7 + $0x40] sm:$0xff] %vm933, %v925
    %943 = vst.msk [vmem:[#allocation7 + $0x48] sm:$0xff] %vm933, %v926
    %944 = vst.msk [vmem:[#allocation7 + $0x50] sm:$0xff] %vm933, %v927
    %945 = vst.msk [vmem:[#allocation7 + $0x58] sm:$0xff] %vm933, %v928
    %946 = vst.msk [vmem:[#allocation7 + $0x60] sm:$0xff] %vm933, %v929
    %947 = vst.msk [vmem:[#allocation7 + $0x68] sm:$0xff] %vm933, %v930
    %948 = vst.msk [vmem:[#allocation7 + $0x70] sm:$0xff] %vm933, %v931
    %949 = vst.msk [vmem:[#allocation7 + $0x78] sm:$0xff] %vm933, %v932
    // Predicated region
    $region18: #{tpu_custom_call.1} parent=1 // pred_check
      _
    $region19: #{tpu_custom_call.1} parent=1 // pred_check_branch
      %951 = sbr.rel (0) target = $region21
    $region20: #{tpu_custom_call.1} parent=1 // pred_region
      %s953 = ssub.s32 2048, 2048
      %954 = vsyncadd [#allocation4], %s953
      %s955 = sshll.u32 [#allocation7], 4
      %s956 = int_to_ptr.vmem [resolvable:$true] %s955
      %961 = dma.vmem_to_hbm [thread:$0]  %s956, 2048, %s2, [#allocation4], 128, 128, 8
    $region21: #{tpu_custom_call.1} parent=1 // pred_fallthru
      _
    // Predicated region
    $region22: #{tpu_custom_call.1} parent=1 // pred_check
      _
    $region23: #{tpu_custom_call.1} parent=1 // pred_check_branch
      %963 = sbr.rel (0) target = $region25
    $region24: #{tpu_custom_call.1} parent=1 // pred_region
      %964 = dma.done [#allocation4], 2048
    $region25: #{tpu_custom_call.1} parent=1 // pred_fallthru
      _
    %965 = vsyncpa [#allocation3], 1
    %966 = vsyncpa [#allocation4], 1
    %967 = vsyncpa [#allocation5], 1

</llo_original>
